<compile_context>
chip_gen: v6e
topology: v6e:2x2x1
jax: 0.10.0
libtpu: 0.0.40
codegen_flags: <defaults>
</compile_context>

<pallas_src>
import functools

import jax
import jax.numpy as jnp
from jax import lax
from jax.experimental import pallas as pl
from jax.experimental.pallas import tpu as pltpu

HIDDEN = 30  # nn.Linear(s_dim, 30) / nn.Linear(a_dim, 30)


def _round_up(x, m):
    return ((x + m - 1) // m) * m


def cnetv_kernel(s_ref, a_ref, ws_ref, wa_ref, head_ref, v_ref):
    """One batch tile.

    s_ref:  [TB, s_dim]   a_ref: [TB, a_dim]
    ws_ref: [s_dim, H]    wa_ref: [a_dim, H]
    head_ref: [8, H]  (row0 = bs+ba, row1 = Wo^T, row2[0] = bo)
    v_ref:  [1, 1, TB]    (lane-dense value row)
    """
    head = head_ref[...]                 # [8, H]
    b = head[0:1, :]                     # [1, H]  folded bias bs + ba
    wo_row = head[1:2, :]                # [1, H]  output weights as a row
    bo = head[2:3, 0:1]                  # [1, 1]  output bias

    # Hidden layer: two MXU matmuls sharing one f32 accumulator + bias + ReLU.
    net = jnp.dot(s_ref[...], ws_ref[...], preferred_element_type=jnp.float32)
    net = net + jnp.dot(a_ref[...], wa_ref[...],
                        preferred_element_type=jnp.float32)
    net = jnp.maximum(net + b, jnp.float32(0.0))             # [TB, H]

    # Lane-dense head: contract HIDDEN so the batch lands on the lane axis.
    v = lax.dot_general(wo_row, net, (((1,), (1,)), ((), ())),
                        preferred_element_type=jnp.float32)  # [1, TB]
    v_ref[0] = v + bo


def pack_params(params):
    """Pack parameters once (outside the training/inference step)."""
    ws, bs, wa, ba, wo, bo = params
    head = jnp.zeros((8, HIDDEN), jnp.float32)
    head = head.at[0, :].set((bs + ba).reshape(HIDDEN))  # folded hidden bias
    head = head.at[1, :].set(wo.reshape(HIDDEN))         # Wo^T as a row
    head = head.at[2, 0].set(bo.reshape(()))             # output bias scalar
    return ws, wa, head


@functools.partial(jax.jit, static_argnames=("tb_max",))
def cnetv_forward(s, a, packed, *, tb_max=1024):
    """s: [B, s_dim], a: [B, a_dim] -> v: [B, 1]."""
    w_s, w_a, head = packed
    B, s_dim = s.shape
    a_dim = a.shape[1]

    # Batch tiling: lane-dense output wants TB to be a multiple of 128.
    tb = min(tb_max, _round_up(B, 128))
    nt = pl.cdiv(B, tb)
    b_pad = nt * tb
    if b_pad != B:  # only copies activations when B is not already tile-sized
        s = jnp.pad(s, ((0, b_pad - B), (0, 0)))
        a = jnp.pad(a, ((0, b_pad - B), (0, 0)))

    out = pl.pallas_call(
        cnetv_kernel,
        out_shape=jax.ShapeDtypeStruct((nt, 1, tb), jnp.float32),
        grid_spec=pltpu.PrefetchScalarGridSpec(
            num_scalar_prefetch=0,
            grid=(nt,),
            in_specs=[
                pl.BlockSpec((tb, s_dim), lambda i: (i, 0)),      # s batch tile
                pl.BlockSpec((tb, a_dim), lambda i: (i, 0)),      # a batch tile
                pl.BlockSpec((s_dim, HIDDEN), lambda i: (0, 0)),  # resident Ws
                pl.BlockSpec((a_dim, HIDDEN), lambda i: (0, 0)),  # resident Wa
                pl.BlockSpec((8, HIDDEN), lambda i: (0, 0)),      # resident head
            ],
            out_specs=pl.BlockSpec((1, 1, tb), lambda i: (i, 0, 0)),
        ),
        compiler_params=pltpu.CompilerParams(
            dimension_semantics=("parallel",)),
        cost_estimate=pl.CostEstimate(
            flops=2 * b_pad * (s_dim + a_dim + 1) * HIDDEN,
            transcendentals=0,
            bytes_accessed=4 * (b_pad * (s_dim + a_dim + 1)
                                + (s_dim + a_dim + 8) * HIDDEN)),
    )(s, a, w_s, w_a, head)

    # out[i, 0, j] is the value for batch row i*tb + j.
    return out.reshape(-1)[:B].reshape(B, 1)


def init_params(key, s_dim, a_dim):
    """Weights stored transposed ([in, out]) vs PyTorch's [out, in]."""
    k = jax.random.split(key, 6)
    ws = 0.1 * jax.random.normal(k[0], (s_dim, HIDDEN), jnp.float32)
    wa = 0.1 * jax.random.normal(k[1], (a_dim, HIDDEN), jnp.float32)
    wo = 0.1 * jax.random.normal(k[2], (HIDDEN, 1), jnp.float32)
    bs = jax.random.uniform(k[3], (1, HIDDEN), jnp.float32,
                            -1.0 / jnp.sqrt(s_dim), 1.0 / jnp.sqrt(s_dim))
    ba = jax.random.uniform(k[4], (1, HIDDEN), jnp.float32,
                            -1.0 / jnp.sqrt(a_dim), 1.0 / jnp.sqrt(a_dim))
    bo = jax.random.uniform(k[5], (1, 1), jnp.float32,
                            -1.0 / jnp.sqrt(HIDDEN), 1.0 / jnp.sqrt(HIDDEN))
    return ws, bs, wa, ba, wo, bo


def cnetv_reference(s, a, params):
    ws, bs, wa, ba, wo, bo = params
    net = jax.nn.relu(s @ ws + bs + a @ wa + ba)
    return net @ wo + bo


if __name__ == "__main__":
    key = jax.random.PRNGKey(0)
    k_s, k_a, k_p = jax.random.split(key, 3)

    B, S_DIM, A_DIM = 8, 16, 4  # small shapes: batch=8, s_dim=16, a_dim=4
    s = jax.random.normal(k_s, (B, S_DIM), jnp.float32)
    a = jax.random.normal(k_a, (B, A_DIM), jnp.float32)
    params = init_params(k_p, S_DIM, A_DIM)
    packed = pack_params(params)  # done once, reused across forward calls

    v = jax.block_until_ready(cnetv_forward(s, a, packed))
    v_ref = cnetv_reference(s, a, params)

    assert v.shape == (B, 1)
    assert jnp.allclose(v, v_ref, atol=2e-5, rtol=2e-5), float(
        jnp.max(jnp.abs(v - v_ref)))

    print("KERNEL_OK")
</pallas_src>

<mosaic_0001>
module attributes {stable_mosaic.version = 11 : i64} {
  func.func @cnetv_kernel(%arg0: i32, %arg1: memref<128x16xf32, #tpu.memory_space<vmem>>, %arg2: memref<128x4xf32, #tpu.memory_space<vmem>>, %arg3: memref<16x30xf32, #tpu.memory_space<vmem>>, %arg4: memref<4x30xf32, #tpu.memory_space<vmem>>, %arg5: memref<8x30xf32, #tpu.memory_space<vmem>>, %arg6: memref<1x1x128xf32, #tpu.memory_space<vmem>>) attributes {dimension_semantics = [#tpu.dimension_semantics<parallel>], iteration_bounds = array<i64: 1>, scalar_prefetch = 0 : i64, scratch_operands = 0 : i64, tpu.core_type = #tpu.core_type<tc>, window_params = [{transform_indices = @transform_0, window_bounds = array<i64: 128, 16>}, {transform_indices = @transform_1, window_bounds = array<i64: 128, 4>}, {pipeline_mode = #tpu.pipeline_mode<synchronous>, transform_indices = @transform_2, window_bounds = array<i64: 16, 30>}, {pipeline_mode = #tpu.pipeline_mode<synchronous>, transform_indices = @transform_3, window_bounds = array<i64: 4, 30>}, {pipeline_mode = #tpu.pipeline_mode<synchronous>, transform_indices = @transform_4, window_bounds = array<i64: 8, 30>}, {transform_indices = @transform_5, window_bounds = array<i64: 1, 1, 128>}]} {
    %c0 = arith.constant 0 : index
    %c0_0 = arith.constant 0 : index
    %0 = vector.load %arg5[%c0, %c0_0] : memref<8x30xf32, #tpu.memory_space<vmem>>, vector<8x30xf32>
    %1 = vector.extract_strided_slice %0 {offsets = [0, 0], sizes = [1, 30], strides = [1, 1]} : vector<8x30xf32> to vector<1x30xf32>
    %2 = vector.extract_strided_slice %0 {offsets = [1, 0], sizes = [1, 30], strides = [1, 1]} : vector<8x30xf32> to vector<1x30xf32>
    %3 = vector.extract_strided_slice %0 {offsets = [2, 0], sizes = [1, 1], strides = [1, 1]} : vector<8x30xf32> to vector<1x1xf32>
    %c0_1 = arith.constant 0 : index
    %c0_2 = arith.constant 0 : index
    %4 = vector.load %arg1[%c0_1, %c0_2] : memref<128x16xf32, #tpu.memory_space<vmem>>, vector<128x16xf32>
    %c0_3 = arith.constant 0 : index
    %c0_4 = arith.constant 0 : index
    %5 = vector.load %arg3[%c0_3, %c0_4] : memref<16x30xf32, #tpu.memory_space<vmem>>, vector<16x30xf32>
    %cst = arith.constant dense<0.000000e+00> : vector<128x30xf32>
    %6 = tpu.matmul %4, %5, %cst {dimension_numbers = #tpu.dot_dimension_numbers<[1], [0], [0], [1], [0, 0, 1, 1], [], []>} : vector<128x16xf32>, vector<16x30xf32>, vector<128x30xf32> -> vector<128x30xf32>
    %c0_5 = arith.constant 0 : index
    %c0_6 = arith.constant 0 : index
    %7 = vector.load %arg2[%c0_5, %c0_6] : memref<128x4xf32, #tpu.memory_space<vmem>>, vector<128x4xf32>
    %c0_7 = arith.constant 0 : index
    %c0_8 = arith.constant 0 : index
    %8 = vector.load %arg4[%c0_7, %c0_8] : memref<4x30xf32, #tpu.memory_space<vmem>>, vector<4x30xf32>
    %cst_9 = arith.constant dense<0.000000e+00> : vector<128x30xf32>
    %9 = tpu.matmul %7, %8, %cst_9 {dimension_numbers = #tpu.dot_dimension_numbers<[1], [0], [0], [1], [0, 0, 1, 1], [], []>} : vector<128x4xf32>, vector<4x30xf32>, vector<128x30xf32> -> vector<128x30xf32>
    %10 = arith.addf %6, %9 : vector<128x30xf32>
    %11 = vector.broadcast %1 : vector<1x30xf32> to vector<128x30xf32>
    %12 = arith.addf %10, %11 : vector<128x30xf32>
    %cst_10 = arith.constant 0.000000e+00 : f32
    %13 = vector.broadcast %cst_10 : f32 to vector<128x30xf32>
    %14 = arith.maximumf %12, %13 : vector<128x30xf32>
    %cst_11 = arith.constant dense<0.000000e+00> : vector<1x128xf32>
    %15 = tpu.matmul %2, %14, %cst_11 {dimension_numbers = #tpu.dot_dimension_numbers<[1], [1], [0], [0], [0, 0, 1, 0], [], []>} : vector<1x30xf32>, vector<128x30xf32>, vector<1x128xf32> -> vector<1x128xf32>
    %16 = vector.broadcast %3 : vector<1x1xf32> to vector<1x128xf32>
    %17 = arith.addf %15, %16 : vector<1x128xf32>
    %c0_12 = arith.constant 0 : index
    %c0_13 = arith.constant 0 : index
    %c0_14 = arith.constant 0 : index
    %18 = vector.load %arg6[%c0_12, %c0_13, %c0_14] : memref<1x1x128xf32, #tpu.memory_space<vmem>>, vector<1x1x128xf32>
    %19 = vector.shape_cast %18 : vector<1x1x128xf32> to vector<1x128xf32>
    %20 = vector.shape_cast %17 : vector<1x128xf32> to vector<1x1x128xf32>
    tpu.vector_store %arg6[%c0_12, %c0_13, %c0_14], %20 {strides = array<i32>} : memref<1x1x128xf32, #tpu.memory_space<vmem>>, vector<1x1x128xf32>,
    return
  }
  func.func @transform_0(%arg0: i32) -> (i32, i32) {
    %c0_i32 = arith.constant 0 : i32
    %c0_i32_0 = arith.constant 0 : i32
    return %arg0, %c0_i32 : i32, i32
  }
  func.func @transform_1(%arg0: i32) -> (i32, i32) {
    %c0_i32 = arith.constant 0 : i32
    %c0_i32_0 = arith.constant 0 : i32
    return %arg0, %c0_i32 : i32, i32
  }
  func.func @transform_2(%arg0: i32) -> (i32, i32) {
    %c0_i32 = arith.constant 0 : i32
    %c0_i32_0 = arith.constant 0 : i32
    %c0_i32_1 = arith.constant 0 : i32
    return %c0_i32, %c0_i32_0 : i32, i32
  }
  func.func @transform_3(%arg0: i32) -> (i32, i32) {
    %c0_i32 = arith.constant 0 : i32
    %c0_i32_0 = arith.constant 0 : i32
    %c0_i32_1 = arith.constant 0 : i32
    return %c0_i32, %c0_i32_0 : i32, i32
  }
  func.func @transform_4(%arg0: i32) -> (i32, i32) {
    %c0_i32 = arith.constant 0 : i32
    %c0_i32_0 = arith.constant 0 : i32
    %c0_i32_1 = arith.constant 0 : i32
    return %c0_i32, %c0_i32_0 : i32, i32
  }
  func.func @transform_5(%arg0: i32) -> (i32, i32, i32) {
    %c0_i32 = arith.constant 0 : i32
    %c0_i32_0 = arith.constant 0 : i32
    %c0_i32_1 = arith.constant 0 : i32
    return %arg0, %c0_i32, %c0_i32_0 : i32, i32, i32
  }
}

</mosaic_0001>

<llo_original>
// kernel: cnetv_forward.1
$region0: #{cnetv_forward.1}
  #allocation0 [shape = 'u32[]', space=smem, size = 0x4, offset = 0x4, fixed_abs, tag = 'smem constant byte address 0x4 - core index']
  #allocation1 [shape = 'u32[144,128]{1,0:T(1,128)}', space=vmem, size = 0x12000, scoped, tag = 'internal scratch']
  %s0 = inlined_call_operand.vmem [shape: f32[128,16], index: 0, kind: input, shape index: {}]
  %s1 = inlined_call_operand.vmem [shape: f32[128,4], index: 1, kind: input, shape index: {}]
  %s2 = inlined_call_operand.vmem [shape: f32[16,30], index: 2, kind: input, shape index: {}]
  %s3 = inlined_call_operand.vmem [shape: f32[4,30], index: 3, kind: input, shape index: {}]
  %s4 = inlined_call_operand.vmem [shape: f32[8,30], index: 4, kind: input, shape index: {}]
  %s5 = inlined_call_operand.vmem [shape: f32[1,1,128], index: 5, kind: output, shape index: {}]
  %s6 = sld [smem:[#allocation0]]
  $region30: #{cnetv_forward.1} parent=0
    _
  %s8 = ssub.s32 1, %s6
  %s9 = scalar_select 0, %s8, %s6
  // Predicated region
  $region2: #{cnetv_forward.1} parent=0 // pred_check
    _
  $region3: #{cnetv_forward.1} parent=0 // pred_check_branch
    %11 = sbr.rel (0) target = $region5
  $region4: #{cnetv_forward.1} parent=0 // pred_region
    _
  $region5: #{cnetv_forward.1} parent=0 // pred_fallthru
    _
  // Predicated region
  $region6: #{cnetv_forward.1} parent=0 // pred_check
    _
  $region7: #{cnetv_forward.1} parent=0 // pred_check_branch
    %13 = sbr.rel (0) target = $region9
  $region8: #{cnetv_forward.1} parent=0 // pred_region
    _
  $region9: #{cnetv_forward.1} parent=0 // pred_fallthru
    _
  // Predicated region
  $region10: #{cnetv_forward.1} parent=0 // pred_check
    _
  $region11: #{cnetv_forward.1} parent=0 // pred_check_branch
    %15 = sbr.rel (0) target = $region13
  $region12: #{cnetv_forward.1} parent=0 // pred_region
    _
  $region13: #{cnetv_forward.1} parent=0 // pred_fallthru
    _
  // Predicated region
  $region14: #{cnetv_forward.1} parent=0 // pred_check
    _
  $region15: #{cnetv_forward.1} parent=0 // pred_check_branch
    %17 = sbr.rel (0) target = $region17
  $region16: #{cnetv_forward.1} parent=0 // pred_region
    _
  $region17: #{cnetv_forward.1} parent=0 // pred_fallthru
    _
  // Predicated region
  $region18: #{cnetv_forward.1} parent=0 // pred_check
    _
  $region19: #{cnetv_forward.1} parent=0 // pred_check_branch
    %19 = sbr.rel (0) target = $region21
  $region20: #{cnetv_forward.1} parent=0 // pred_region
    _
  $region21: #{cnetv_forward.1} parent=0 // pred_fallthru
    _
  %v20 = vld [vmem:[%s4] sm:$0xff]
  %v21 = vld [vmem:[%s0] sm:$0xff]
  %v22 = vld [vmem:[%s0 + $0x8] sm:$0xff]
  %v23 = vld [vmem:[%s0 + $0x10] sm:$0xff]
  %v24 = vld [vmem:[%s0 + $0x18] sm:$0xff]
  %v25 = vld [vmem:[%s0 + $0x20] sm:$0xff]
  %v26 = vld [vmem:[%s0 + $0x28] sm:$0xff]
  %v27 = vld [vmem:[%s0 + $0x30] sm:$0xff]
  %v28 = vld [vmem:[%s0 + $0x38] sm:$0xff]
  %v29 = vld [vmem:[%s0 + $0x40] sm:$0xff]
  %v30 = vld [vmem:[%s0 + $0x48] sm:$0xff]
  %v31 = vld [vmem:[%s0 + $0x50] sm:$0xff]
  %v32 = vld [vmem:[%s0 + $0x58] sm:$0xff]
  %v33 = vld [vmem:[%s0 + $0x60] sm:$0xff]
  %v34 = vld [vmem:[%s0 + $0x68] sm:$0xff]
  %v35 = vld [vmem:[%s0 + $0x70] sm:$0xff]
  %v36 = vld [vmem:[%s0 + $0x78] sm:$0xff]
  %v37 = vld [vmem:[%s2] sm:$0xff]
  %v38 = vld [vmem:[%s2 + $0x8] sm:$0xff]
  %v39 = vld [vmem:[%s1] sm:$0xff]
  %v40 = vld [vmem:[%s1 + $0x8] sm:$0xff]
  %v41 = vld [vmem:[%s1 + $0x10] sm:$0xff]
  %v42 = vld [vmem:[%s1 + $0x18] sm:$0xff]
  %v43 = vld [vmem:[%s1 + $0x20] sm:$0xff]
  %v44 = vld [vmem:[%s1 + $0x28] sm:$0xff]
  %v45 = vld [vmem:[%s1 + $0x30] sm:$0xff]
  %v46 = vld [vmem:[%s1 + $0x38] sm:$0xff]
  %v47 = vld [vmem:[%s1 + $0x40] sm:$0xff]
  %v48 = vld [vmem:[%s1 + $0x48] sm:$0xff]
  %v49 = vld [vmem:[%s1 + $0x50] sm:$0xff]
  %v50 = vld [vmem:[%s1 + $0x58] sm:$0xff]
  %v51 = vld [vmem:[%s1 + $0x60] sm:$0xff]
  %v52 = vld [vmem:[%s1 + $0x68] sm:$0xff]
  %v53 = vld [vmem:[%s1 + $0x70] sm:$0xff]
  %v54 = vld [vmem:[%s1 + $0x78] sm:$0xff]
  %v55 = vld [vmem:[%s3] sm:$0xf]
  %vm56 = vcmask 31744
  %v58 = vsel %vm56, %v39, 0
  %v61 = vsel %vm56, %v40, 0
  %v64 = vsel %vm56, %v41, 0
  %v67 = vsel %vm56, %v42, 0
  %v70 = vsel %vm56, %v43, 0
  %v73 = vsel %vm56, %v44, 0
  %v76 = vsel %vm56, %v45, 0
  %v79 = vsel %vm56, %v46, 0
  %v82 = vsel %vm56, %v47, 0
  %v85 = vsel %vm56, %v48, 0
  %v88 = vsel %vm56, %v49, 0
  %v91 = vsel %vm56, %v50, 0
  %v94 = vsel %vm56, %v51, 0
  %v97 = vsel %vm56, %v52, 0
  %v100 = vsel %vm56, %v53, 0
  %v103 = vsel %vm56, %v54, 0
  %vm105 = vcmask 1043456
  %v107 = vsel %vm105, %v55, 0
  %109 = vmatprep.subr.mxu0 0.0
  %110 = vmatpush1.msra.mxu0 0.0
  %111 = vmatprep.subr.mxu0 0.0
  %112 = vmatpush1.msra.mxu0 0.0
  %113 = vmatprep.subr.mxu0 0.0
  %114 = vmatpush1.msra.mxu0 0.0
  %115 = vmatprep.subr.mxu0 0.0
  %116 = vmatpush1.msra.mxu0 0.0
  %117 = vmatprep.subr.mxu0 0.0
  %118 = vmatpush1.msra.mxu0 0.0
  %119 = vmatprep.subr.mxu0 0.0
  %120 = vmatpush1.msra.mxu0 0.0
  %121 = vmatprep.subr.mxu0 0.0
  %122 = vmatpush1.msra.mxu0 0.0
  %123 = vmatprep.subr.mxu0 0.0
  %124 = vmatpush1.msra.mxu0 0.0
  %125 = vmatprep.subr.mxu0 0.0
  %126 = vmatpush1.msra.mxu0 0.0
  %127 = vmatprep.subr.mxu0 0.0
  %128 = vmatpush1.msra.mxu0 0.0
  %129 = vmatprep.subr.mxu0 0.0
  %130 = vmatpush1.msra.mxu0 0.0
  %131 = vmatprep.subr.mxu0 0.0
  %132 = vmatpush1.msra.mxu0 0.0
  %133 = vmatprep.subr.mxu0 0.0
  %134 = vmatpush1.msra.mxu0 0.0
  %135 = vmatprep.subr.mxu0 0.0
  %136 = vmatpush1.msra.mxu0 0.0
  %137 = vmatprep.subr.mxu0 0.0
  %138 = vmatpush1.msra.mxu0 0.0
  %139 = vmatprep.subr.mxu0 0.0
  %140 = vmatpush1.msra.mxu0 %v107
  %141 = vmatprep.subr.mxu0 0.0
  %142 = vmatpush2.msra.mxu0 0.0
  %143 = vmatprep.subr.mxu0 0.0
  %144 = vmatpush2.msra.mxu0 0.0
  %145 = vmatprep.subr.mxu0 0.0
  %146 = vmatpush2.msra.mxu0 0.0
  %147 = vmatprep.subr.mxu0 0.0
  %148 = vmatpush2.msra.mxu0 0.0
  %149 = vmatprep.subr.mxu0 0.0
  %150 = vmatpush2.msra.mxu0 0.0
  %151 = vmatprep.subr.mxu0 0.0
  %152 = vmatpush2.msra.mxu0 0.0
  %153 = vmatprep.subr.mxu0 0.0
  %154 = vmatpush2.msra.mxu0 0.0
  %155 = vmatprep.subr.mxu0 0.0
  %156 = vmatpush2.msra.mxu0 0.0
  %157 = vmatprep.subr.mxu0 0.0
  %158 = vmatpush2.msra.mxu0 0.0
  %159 = vmatprep.subr.mxu0 0.0
  %160 = vmatpush2.msra.mxu0 0.0
  %161 = vmatprep.subr.mxu0 0.0
  %162 = vmatpush2.msra.mxu0 0.0
  %163 = vmatprep.subr.mxu0 0.0
  %164 = vmatpush2.msra.mxu0 0.0
  %165 = vmatprep.subr.mxu0 0.0
  %166 = vmatpush2.msra.mxu0 0.0
  %167 = vmatprep.subr.mxu0 0.0
  %168 = vmatpush2.msra.mxu0 0.0
  %169 = vmatprep.subr.mxu0 0.0
  %170 = vmatpush2.msra.mxu0 0.0
  %171 = vmatprep.subr.mxu0 0.0
  %172 = vmatpush2.msra.mxu0 0.0
  %173 = vmatprep.mubr.f32.mxu0 0.0
  %174 = vmatmul.mubr.f32.gmra.mxu0 %v58
  %v175 = vpop.f32.mrf.mxu0
  %v176 = vadd.f32 0.0, %v175
  %v177 = vpop.f32.mrf.mxu0
  %178 = vmatprep.mubr.f32.mxu0 0.0
  %179 = vmatmul.mubr.f32.gmra.mxu0 %v61
  %v180 = vpop.f32.mrf.mxu0
  %v181 = vadd.f32 0.0, %v180
  %v182 = vpop.f32.mrf.mxu0
  %183 = vmatprep.mubr.f32.mxu0 0.0
  %184 = vmatmul.mubr.f32.gmra.mxu0 %v64
  %v185 = vpop.f32.mrf.mxu0
  %v186 = vadd.f32 0.0, %v185
  %v187 = vpop.f32.mrf.mxu0
  %188 = vmatprep.mubr.f32.mxu0 0.0
  %189 = vmatmul.mubr.f32.gmra.mxu0 %v67
  %v190 = vpop.f32.mrf.mxu0
  %v191 = vadd.f32 0.0, %v190
  %v192 = vpop.f32.mrf.mxu0
  %193 = vmatprep.mubr.f32.mxu0 0.0
  %194 = vmatmul.mubr.f32.gmra.mxu0 %v70
  %v195 = vpop.f32.mrf.mxu0
  %v196 = vadd.f32 0.0, %v195
  %v197 = vpop.f32.mrf.mxu0
  %198 = vmatprep.mubr.f32.mxu0 0.0
  %199 = vmatmul.mubr.f32.gmra.mxu0 %v73
  %v200 = vpop.f32.mrf.mxu0
  %v201 = vadd.f32 0.0, %v200
  %v202 = vpop.f32.mrf.mxu0
  %203 = vmatprep.mubr.f32.mxu0 0.0
  %204 = vmatmul.mubr.f32.gmra.mxu0 %v76
  %v205 = vpop.f32.mrf.mxu0
  %v206 = vadd.f32 0.0, %v205
  %v207 = vpop.f32.mrf.mxu0
  %208 = vmatprep.mubr.f32.mxu0 0.0
  %209 = vmatmul.mubr.f32.gmra.mxu0 %v79
  %v210 = vpop.f32.mrf.mxu0
  %v211 = vadd.f32 0.0, %v210
  %v212 = vpop.f32.mrf.mxu0
  %213 = vmatprep.mubr.f32.mxu0 0.0
  %214 = vmatmul.mubr.f32.gmra.mxu0 %v82
  %v215 = vpop.f32.mrf.mxu0
  %v216 = vadd.f32 0.0, %v215
  %v217 = vpop.f32.mrf.mxu0
  %218 = vmatprep.mubr.f32.mxu0 0.0
  %219 = vmatmul.mubr.f32.gmra.mxu0 %v85
  %v220 = vpop.f32.mrf.mxu0
  %v221 = vadd.f32 0.0, %v220
  %v222 = vpop.f32.mrf.mxu0
  %223 = vmatprep.mubr.f32.mxu0 0.0
  %224 = vmatmul.mubr.f32.gmra.mxu0 %v88
  %v225 = vpop.f32.mrf.mxu0
  %v226 = vadd.f32 0.0, %v225
  %v227 = vpop.f32.mrf.mxu0
  %228 = vmatprep.mubr.f32.mxu0 0.0
  %229 = vmatmul.mubr.f32.gmra.mxu0 %v91
  %v230 = vpop.f32.mrf.mxu0
  %v231 = vadd.f32 0.0, %v230
  %v232 = vpop.f32.mrf.mxu0
  %233 = vmatprep.mubr.f32.mxu0 0.0
  %234 = vmatmul.mubr.f32.gmra.mxu0 %v94
  %v235 = vpop.f32.mrf.mxu0
  %v236 = vadd.f32 0.0, %v235
  %v237 = vpop.f32.mrf.mxu0
  %238 = vmatprep.mubr.f32.mxu0 0.0
  %239 = vmatmul.mubr.f32.gmra.mxu0 %v97
  %v240 = vpop.f32.mrf.mxu0
  %v241 = vadd.f32 0.0, %v240
  %v242 = vpop.f32.mrf.mxu0
  %243 = vmatprep.mubr.f32.mxu0 0.0
  %244 = vmatmul.mubr.f32.gmra.mxu0 %v100
  %v245 = vpop.f32.mrf.mxu0
  %v246 = vadd.f32 0.0, %v245
  %v247 = vpop.f32.mrf.mxu0
  %248 = vmatprep.mubr.f32.mxu0 0.0
  %249 = vmatmul.mubr.f32.gmra.mxu0 %v103
  %v250 = vpop.f32.mrf.mxu0
  %v251 = vadd.f32 0.0, %v250
  %v252 = vpop.f32.mrf.mxu0
  %253 = vdwg.mxu0
  %vm254 = vcmask 130048
  %v256 = vsel %vm254, %v21, 0
  %v259 = vsel %vm254, %v22, 0
  %v262 = vsel %vm254, %v23, 0
  %v265 = vsel %vm254, %v24, 0
  %v268 = vsel %vm254, %v25, 0
  %v271 = vsel %vm254, %v26, 0
  %v274 = vsel %vm254, %v27, 0
  %v277 = vsel %vm254, %v28, 0
  %v280 = vsel %vm254, %v29, 0
  %v283 = vsel %vm254, %v30, 0
  %v286 = vsel %vm254, %v31, 0
  %v289 = vsel %vm254, %v32, 0
  %v292 = vsel %vm254, %v33, 0
  %v295 = vsel %vm254, %v34, 0
  %v298 = vsel %vm254, %v35, 0
  %v301 = vsel %vm254, %v36, 0
  %303 = vmatprep.subr.mxu0 0.0
  %304 = vmatpush1.msra.mxu0 0.0
  %305 = vmatprep.subr.mxu0 0.0
  %306 = vmatpush1.msra.mxu0 0.0
  %307 = vmatprep.subr.mxu0 0.0
  %308 = vmatpush1.msra.mxu0 0.0
  %309 = vmatprep.subr.mxu0 0.0
  %310 = vmatpush1.msra.mxu0 0.0
  %311 = vmatprep.subr.mxu0 0.0
  %312 = vmatpush1.msra.mxu0 0.0
  %313 = vmatprep.subr.mxu0 0.0
  %314 = vmatpush1.msra.mxu0 0.0
  %315 = vmatprep.subr.mxu0 0.0
  %316 = vmatpush1.msra.mxu0 0.0
  %317 = vmatprep.subr.mxu0 0.0
  %318 = vmatpush1.msra.mxu0 0.0
  %319 = vmatprep.subr.mxu0 0.0
  %320 = vmatpush1.msra.mxu0 0.0
  %321 = vmatprep.subr.mxu0 0.0
  %322 = vmatpush1.msra.mxu0 0.0
  %323 = vmatprep.subr.mxu0 0.0
  %324 = vmatpush1.msra.mxu0 0.0
  %325 = vmatprep.subr.mxu0 0.0
  %326 = vmatpush1.msra.mxu0 0.0
  %327 = vmatprep.subr.mxu0 0.0
  %328 = vmatpush1.msra.mxu0 0.0
  %329 = vmatprep.subr.mxu0 0.0
  %330 = vmatpush1.msra.mxu0 0.0
  %331 = vmatprep.subr.mxu0 0.0
  %332 = vmatpush1.msra.mxu0 %v38
  %333 = vmatprep.subr.mxu0 0.0
  %334 = vmatpush1.msra.mxu0 %v37
  %335 = vmatprep.subr.mxu0 0.0
  %336 = vmatpush2.msra.mxu0 0.0
  %337 = vmatprep.subr.mxu0 0.0
  %338 = vmatpush2.msra.mxu0 0.0
  %339 = vmatprep.subr.mxu0 0.0
  %340 = vmatpush2.msra.mxu0 0.0
  %341 = vmatprep.subr.mxu0 0.0
  %342 = vmatpush2.msra.mxu0 0.0
  %343 = vmatprep.subr.mxu0 0.0
  %344 = vmatpush2.msra.mxu0 0.0
  %345 = vmatprep.subr.mxu0 0.0
  %346 = vmatpush2.msra.mxu0 0.0
  %347 = vmatprep.subr.mxu0 0.0
  %348 = vmatpush2.msra.mxu0 0.0
  %349 = vmatprep.subr.mxu0 0.0
  %350 = vmatpush2.msra.mxu0 0.0
  %351 = vmatprep.subr.mxu0 0.0
  %352 = vmatpush2.msra.mxu0 0.0
  %353 = vmatprep.subr.mxu0 0.0
  %354 = vmatpush2.msra.mxu0 0.0
  %355 = vmatprep.subr.mxu0 0.0
  %356 = vmatpush2.msra.mxu0 0.0
  %357 = vmatprep.subr.mxu0 0.0
  %358 = vmatpush2.msra.mxu0 0.0
  %359 = vmatprep.subr.mxu0 0.0
  %360 = vmatpush2.msra.mxu0 0.0
  %361 = vmatprep.subr.mxu0 0.0
  %362 = vmatpush2.msra.mxu0 0.0
  %363 = vmatprep.subr.mxu0 0.0
  %364 = vmatpush2.msra.mxu0 0.0
  %365 = vmatprep.subr.mxu0 0.0
  %366 = vmatpush2.msra.mxu0 0.0
  %367 = vmatprep.mubr.f32.mxu0 0.0
  %368 = vmatmul.mubr.f32.gmra.mxu0 %v256
  %v369 = vpop.f32.mrf.mxu0
  %v370 = vadd.f32 %v176, %v369
  %v371 = vpop.f32.mrf.mxu0
  %372 = vmatprep.mubr.f32.mxu0 0.0
  %373 = vmatmul.mubr.f32.gmra.mxu0 %v259
  %v374 = vpop.f32.mrf.mxu0
  %v375 = vadd.f32 %v181, %v374
  %v376 = vpop.f32.mrf.mxu0
  %377 = vmatprep.mubr.f32.mxu0 0.0
  %378 = vmatmul.mubr.f32.gmra.mxu0 %v262
  %v379 = vpop.f32.mrf.mxu0
  %v380 = vadd.f32 %v186, %v379
  %v381 = vpop.f32.mrf.mxu0
  %382 = vmatprep.mubr.f32.mxu0 0.0
  %383 = vmatmul.mubr.f32.gmra.mxu0 %v265
  %v384 = vpop.f32.mrf.mxu0
  %v385 = vadd.f32 %v191, %v384
  %v386 = vpop.f32.mrf.mxu0
  %387 = vmatprep.mubr.f32.mxu0 0.0
  %388 = vmatmul.mubr.f32.gmra.mxu0 %v268
  %v389 = vpop.f32.mrf.mxu0
  %v390 = vadd.f32 %v196, %v389
  %v391 = vpop.f32.mrf.mxu0
  %392 = vmatprep.mubr.f32.mxu0 0.0
  %393 = vmatmul.mubr.f32.gmra.mxu0 %v271
  %v394 = vpop.f32.mrf.mxu0
  %v395 = vadd.f32 %v201, %v394
  %v396 = vpop.f32.mrf.mxu0
  %397 = vmatprep.mubr.f32.mxu0 0.0
  %398 = vmatmul.mubr.f32.gmra.mxu0 %v274
  %v399 = vpop.f32.mrf.mxu0
  %v400 = vadd.f32 %v206, %v399
  %v401 = vpop.f32.mrf.mxu0
  %402 = vmatprep.mubr.f32.mxu0 0.0
  %403 = vmatmul.mubr.f32.gmra.mxu0 %v277
  %v404 = vpop.f32.mrf.mxu0
  %v405 = vadd.f32 %v211, %v404
  %v406 = vpop.f32.mrf.mxu0
  %407 = vmatprep.mubr.f32.mxu0 0.0
  %408 = vmatmul.mubr.f32.gmra.mxu0 %v280
  %v409 = vpop.f32.mrf.mxu0
  %v410 = vadd.f32 %v216, %v409
  %v411 = vpop.f32.mrf.mxu0
  %412 = vmatprep.mubr.f32.mxu0 0.0
  %413 = vmatmul.mubr.f32.gmra.mxu0 %v283
  %v414 = vpop.f32.mrf.mxu0
  %v415 = vadd.f32 %v221, %v414
  %v416 = vpop.f32.mrf.mxu0
  %417 = vmatprep.mubr.f32.mxu0 0.0
  %418 = vmatmul.mubr.f32.gmra.mxu0 %v286
  %v419 = vpop.f32.mrf.mxu0
  %v420 = vadd.f32 %v226, %v419
  %v421 = vpop.f32.mrf.mxu0
  %422 = vmatprep.mubr.f32.mxu0 0.0
  %423 = vmatmul.mubr.f32.gmra.mxu0 %v289
  %v424 = vpop.f32.mrf.mxu0
  %v425 = vadd.f32 %v231, %v424
  %v426 = vpop.f32.mrf.mxu0
  %427 = vmatprep.mubr.f32.mxu0 0.0
  %428 = vmatmul.mubr.f32.gmra.mxu0 %v292
  %v429 = vpop.f32.mrf.mxu0
  %v430 = vadd.f32 %v236, %v429
  %v431 = vpop.f32.mrf.mxu0
  %432 = vmatprep.mubr.f32.mxu0 0.0
  %433 = vmatmul.mubr.f32.gmra.mxu0 %v295
  %v434 = vpop.f32.mrf.mxu0
  %v435 = vadd.f32 %v241, %v434
  %v436 = vpop.f32.mrf.mxu0
  %437 = vmatprep.mubr.f32.mxu0 0.0
  %438 = vmatmul.mubr.f32.gmra.mxu0 %v298
  %v439 = vpop.f32.mrf.mxu0
  %v440 = vadd.f32 %v246, %v439
  %v441 = vpop.f32.mrf.mxu0
  %442 = vmatprep.mubr.f32.mxu0 0.0
  %443 = vmatmul.mubr.f32.gmra.mxu0 %v301
  %v444 = vpop.f32.mrf.mxu0
  %v445 = vadd.f32 %v251, %v444
  %v446 = vpop.f32.mrf.mxu0
  %447 = vdwg.mxu0
  %v448 = vlaneseq
  %v449 = vshrl.u32 %v448, 7
  %v450 = vsub.s32 0, %v449
  %v451 = vrot.slane %v20, %v450
  %v452 = vadd.f32 %v370, %v451
  %v453 = vadd.f32 %v375, %v451
  %v454 = vadd.f32 %v380, %v451
  %v455 = vadd.f32 %v385, %v451
  %v456 = vadd.f32 %v390, %v451
  %v457 = vadd.f32 %v395, %v451
  %v458 = vadd.f32 %v400, %v451
  %v459 = vadd.f32 %v405, %v451
  %v460 = vadd.f32 %v410, %v451
  %v461 = vadd.f32 %v415, %v451
  %v462 = vadd.f32 %v420, %v451
  %v463 = vadd.f32 %v425, %v451
  %v464 = vadd.f32 %v430, %v451
  %v465 = vadd.f32 %v435, %v451
  %v466 = vadd.f32 %v440, %v451
  %v467 = vadd.f32 %v445, %v451
  %v468 = vmax.f32 %v452, 0.0
  %v469 = vmax.f32 %v453, 0.0
  %v470 = vmax.f32 %v454, 0.0
  %v471 = vmax.f32 %v455, 0.0
  %v472 = vmax.f32 %v456, 0.0
  %v473 = vmax.f32 %v457, 0.0
  %v474 = vmax.f32 %v458, 0.0
  %v475 = vmax.f32 %v459, 0.0
  %v476 = vmax.f32 %v460, 0.0
  %v477 = vmax.f32 %v461, 0.0
  %v478 = vmax.f32 %v462, 0.0
  %v479 = vmax.f32 %v463, 0.0
  %v480 = vmax.f32 %v464, 0.0
  %v481 = vmax.f32 %v465, 0.0
  %v482 = vmax.f32 %v466, 0.0
  %v483 = vmax.f32 %v467, 0.0
  %485 = vset.pattern.permute.xlu0 0
  %486 = vperm.xlu0 %485, %v20
  %v487 = vpop.permute.xlu0 %486
  %v488 = vrot.slane %v20, 1
  %v489 = vrot.slane %v487, 2
  %vm491 = vcmask 244736
  %v492 = vsel %vm491, %v488, 0
  %v495 = vsel %vm491, %v468, 0
  %v498 = vsel %vm491, %v469, 0
  %v501 = vsel %vm491, %v470, 0
  %v504 = vsel %vm491, %v471, 0
  %v507 = vsel %vm491, %v472, 0
  %v510 = vsel %vm491, %v473, 0
  %v513 = vsel %vm491, %v474, 0
  %v516 = vsel %vm491, %v475, 0
  %v519 = vsel %vm491, %v476, 0
  %v522 = vsel %vm491, %v477, 0
  %v525 = vsel %vm491, %v478, 0
  %v528 = vsel %vm491, %v479, 0
  %v531 = vsel %vm491, %v480, 0
  %v534 = vsel %vm491, %v481, 0
  %v537 = vsel %vm491, %v482, 0
  %v540 = vsel %vm491, %v483, 0
  %542 = vmatprep.subr.mxu0 0.0
  %543 = vmatpush1.xpose.msra.mxu0 %v540
  %544 = vmatprep.subr.mxu0 0.0
  %545 = vmatpush1.xpose.msra.mxu0 %v537
  %546 = vmatprep.subr.mxu0 0.0
  %547 = vmatpush1.xpose.msra.mxu0 %v534
  %548 = vmatprep.subr.mxu0 0.0
  %549 = vmatpush1.xpose.msra.mxu0 %v531
  %550 = vmatprep.subr.mxu0 0.0
  %551 = vmatpush1.xpose.msra.mxu0 %v528
  %552 = vmatprep.subr.mxu0 0.0
  %553 = vmatpush1.xpose.msra.mxu0 %v525
  %554 = vmatprep.subr.mxu0 0.0
  %555 = vmatpush1.xpose.msra.mxu0 %v522
  %556 = vmatprep.subr.mxu0 0.0
  %557 = vmatpush1.xpose.msra.mxu0 %v519
  %558 = vmatprep.subr.mxu0 0.0
  %559 = vmatpush1.xpose.msra.mxu0 %v516
  %560 = vmatprep.subr.mxu0 0.0
  %561 = vmatpush1.xpose.msra.mxu0 %v513
  %562 = vmatprep.subr.mxu0 0.0
  %563 = vmatpush1.xpose.msra.mxu0 %v510
  %564 = vmatprep.subr.mxu0 0.0
  %565 = vmatpush1.xpose.msra.mxu0 %v507
  %566 = vmatprep.subr.mxu0 0.0
  %567 = vmatpush1.xpose.msra.mxu0 %v504
  %568 = vmatprep.subr.mxu0 0.0
  %569 = vmatpush1.xpose.msra.mxu0 %v501
  %570 = vmatprep.subr.mxu0 0.0
  %571 = vmatpush1.xpose.msra.mxu0 %v498
  %572 = vmatprep.subr.mxu0 0.0
  %573 = vmatpush1.xpose.msra.mxu0 %v495
  %574 = vmatprep.subr.mxu0 0.0
  %575 = vmatpush2.xpose.msra.mxu0 0.0
  %576 = vmatprep.subr.mxu0 0.0
  %577 = vmatpush2.xpose.msra.mxu0 0.0
  %578 = vmatprep.subr.mxu0 0.0
  %579 = vmatpush2.xpose.msra.mxu0 0.0
  %580 = vmatprep.subr.mxu0 0.0
  %581 = vmatpush2.xpose.msra.mxu0 0.0
  %582 = vmatprep.subr.mxu0 0.0
  %583 = vmatpush2.xpose.msra.mxu0 0.0
  %584 = vmatprep.subr.mxu0 0.0
  %585 = vmatpush2.xpose.msra.mxu0 0.0
  %586 = vmatprep.subr.mxu0 0.0
  %587 = vmatpush2.xpose.msra.mxu0 0.0
  %588 = vmatprep.subr.mxu0 0.0
  %589 = vmatpush2.xpose.msra.mxu0 0.0
  %590 = vmatprep.subr.mxu0 0.0
  %591 = vmatpush2.xpose.msra.mxu0 0.0
  %592 = vmatprep.subr.mxu0 0.0
  %593 = vmatpush2.xpose.msra.mxu0 0.0
  %594 = vmatprep.subr.mxu0 0.0
  %595 = vmatpush2.xpose.msra.mxu0 0.0
  %596 = vmatprep.subr.mxu0 0.0
  %597 = vmatpush2.xpose.msra.mxu0 0.0
  %598 = vmatprep.subr.mxu0 0.0
  %599 = vmatpush2.xpose.msra.mxu0 0.0
  %600 = vmatprep.subr.mxu0 0.0
  %601 = vmatpush2.xpose.msra.mxu0 0.0
  %602 = vmatprep.subr.mxu0 0.0
  %603 = vmatpush2.xpose.msra.mxu0 0.0
  %604 = vmatprep.subr.mxu0 0.0
  %605 = vmatpush2.xpose.msra.mxu0 0.0
  %606 = vmatprep.mubr.f32.mxu0 0.0
  %607 = vmatmul.mubr.f32.gmra.mxu0 %v492
  %v608 = vpop.f32.mrf.mxu0
  %v609 = vadd.f32 %v489, %v608
  %v610 = vpop.f32.mrf.mxu0
  %611 = vdwg.mxu0
  %612 = vst [vmem:[%s5] sm:$0x1] %v609
  // Predicated region
  $region22: #{cnetv_forward.1} parent=0 // pred_check
    _
  $region23: #{cnetv_forward.1} parent=0 // pred_check_branch
    %614 = sbr.rel (0) target = $region25
  $region24: #{cnetv_forward.1} parent=0 // pred_region
    _
  $region25: #{cnetv_forward.1} parent=0 // pred_fallthru
    _
  // Predicated region
  $region26: #{cnetv_forward.1} parent=0 // pred_check
    _
  $region27: #{cnetv_forward.1} parent=0 // pred_check_branch
    %616 = sbr.rel (0) target = $region29
  $region28: #{cnetv_forward.1} parent=0 // pred_region
    _
  $region29: #{cnetv_forward.1} parent=0 // pred_fallthru
    _

</llo_original>
